<compile_context>
chip_gen: v7x
topology: tpu7x:2x2x1
jax: 0.10.0
libtpu: 0.0.40
codegen_flags: <defaults>
</compile_context>

<pallas_src>
import functools

import jax
import jax.numpy as jnp
from jax import lax
from jax.experimental import pallas as pl
from jax.experimental.pallas import tpu as pltpu


def _round_up(a, b):
    return ((a + b - 1) // b) * b


# Input-block byte target: big enough to amortize per-step overhead on
# v5e/v6e, small enough that 2x double-buffered blocks + slack fit v7x's
# 64 MiB VMEM.
_TARGET_BLOCK_BYTES = 8 * 1024 * 1024


def _num_core_splits():
    """Independent partial-sum streams: 2 for v7x megacore, 1 for 1-TC chips.

    Best-effort hardware query; any failure falls back to 2 (with in-kernel
    ragged masking an unused split costs at most one masked block step).
    """
    try:
        info = pltpu.get_tpu_info()
        for attr in ("num_tensorcores", "tensorcores_per_chip",
                     "num_cores", "core_count"):
            val = getattr(info, attr, None)
            if val is None:
                continue
            try:
                n = int(val)
            except (TypeError, ValueError):
                continue
            if n > 0:
                return max(1, min(2, n))
    except Exception:
        pass
    return 2


def _smoothness_kernel(mask_ref, x_ref, out_ref, *, nc, tb, nb_per_core, hw, w,
                       needs_row_mask, compute_dtype):
    c = pl.program_id(0)   # core split (parallel)
    i = pl.program_id(1)   # block stream (arbitrary / reduction axis)

    @pl.when(i == 0)
    def _init():
        out_ref[...] = jnp.zeros_like(out_ref)

    # Keep stencil math in bf16 when the input is bf16 (v6e/v7x), f32 otherwise.
    # TODO(synk): on v5e (no bf16 VPU) force compute_dtype=f32 even for bf16 inputs.
    x = x_ref[...].astype(compute_dtype)

    # Full-tile neighbor shifts on the flat H*W lane axis (XLU).  Wrap-around
    # values only land on boundary pixels, which the interior mask zeroes.
    # (If W % 128 == 0 these are whole-vreg lane shifts; verify lowering via a
    # bundle dump for other widths.)
    left = pltpu.roll(x, 1, axis=1)          # x[r, c-1]
    right = pltpu.roll(x, hw - 1, axis=1)    # x[r, c+1]
    up = pltpu.roll(x, w, axis=1)            # x[r-1, c]
    down = pltpu.roll(x, hw - w, axis=1)     # x[r+1, c]

    two_x = x + x
    # The f32 interior-mask multiply also serves as the cast to f32 before
    # accumulation (bf16 * f32 -> f32).  Boundary pixels hold real (finite)
    # data, so multiply-by-zero is safe here.
    contrib = (jnp.abs(two_x - left - right) +
               jnp.abs(two_x - up - down)) * mask_ref[...]

    if needs_row_mask:
        # Ragged tail: rows past NC come from the uninitialized part of a
        # partial VMEM block (may be NaN/Inf) -> must select, not multiply.
        row_start = (c * nb_per_core + i) * tb
        rows = row_start + lax.broadcasted_iota(jnp.int32, (tb, 1), 0)
        contrib = jnp.where(rows < nc, contrib, 0.0)

    # Tiny resident accumulator: the output block index is constant along the
    # i axis, so it stays in VMEM; no (tb, HW) scratch, no epilogue reduce.
    out_ref[...] += jnp.sum(contrib)


def smoothness_loss(depth):
    """depth: (N, C, H, W) array -> scalar f32 smoothness loss."""
    assert depth.ndim == 4, (
        "expected 4-dimensional data, but instead got {}".format(depth.ndim))
    N, C, H, W = depth.shape
    assert H > 2 and W > 2, "smoothness loss needs H > 2 and W > 2 (empty interior)"

    NC, HW = N * C, H * W
    x = depth.reshape(NC, HW)                # free collapse; keep native dtype

    compute_dtype = jnp.bfloat16 if depth.dtype == jnp.bfloat16 else jnp.float32

    splits = _num_core_splits()

    # Block sizing: tb slabs per block (~_TARGET_BLOCK_BYTES), tb multiple of 8,
    # capped so both cores can engage when splits == 2.
    itemsize = jnp.dtype(x.dtype).itemsize
    slab_bytes = HW * itemsize
    tb = max(8, (_TARGET_BLOCK_BYTES // slab_bytes) // 8 * 8)
    tb = min(tb, max(8, _round_up(pl.cdiv(NC, splits), 8)))
    # TODO(synk): for very large H*W (single slab >> 8 MiB) add H-strip spatial
    # tiling with a 1-row halo so even a tb=8 block fits v7x's 64 MiB VMEM.

    nb_total = pl.cdiv(NC, tb)               # real row-blocks in the array
    nb_per_core = pl.cdiv(nb_total, splits)
    needs_row_mask = (splits * nb_per_core * tb) != NC

    # Interior mask over the flattened H*W axis (tiny, loaded once and resident).
    row = jnp.arange(H, dtype=jnp.int32)[:, None]
    col = jnp.arange(W, dtype=jnp.int32)[None, :]
    interior = (row >= 1) & (row <= H - 2) & (col >= 1) & (col <= W - 2)
    mask = interior.astype(jnp.float32).reshape(1, HW)

    kernel = functools.partial(
        _smoothness_kernel, nc=NC, tb=tb, nb_per_core=nb_per_core, hw=HW, w=W,
        needs_row_mask=needs_row_mask, compute_dtype=compute_dtype)

    def x_index_map(c, i):
        blk = c * nb_per_core + i
        # Clamp fully-out-of-range steps onto the last real block (the kernel's
        # row-validity mask zeroes their contribution).
        return (jnp.minimum(blk, nb_total - 1), 0)

    # VMEM limit sized from actual usage (2x double-buffered input block +
    # mask + slack) instead of a flat 48 MiB -- keeps headroom on v7x's 64 MiB.
    block_bytes = tb * slab_bytes
    vmem_limit = 2 * block_bytes + 2 * HW * 4 + (4 << 20)
    vmem_limit = int(min(max(vmem_limit, 16 << 20), 96 << 20))

    partials = pl.pallas_call(
        kernel,
        out_shape=jax.ShapeDtypeStruct((splits, 1, 1), jnp.float32),
        grid_spec=pltpu.PrefetchScalarGridSpec(
            num_scalar_prefetch=0,
            grid=(splits, nb_per_core),
            in_specs=[
                pl.BlockSpec((1, HW), lambda c, i: (0, 0)),   # interior mask
                pl.BlockSpec((tb, HW), x_index_map),           # input stream
            ],
            out_specs=pl.BlockSpec((1, 1, 1), lambda c, i: (c, 0, 0)),
        ),
        compiler_params=pltpu.CompilerParams(
            dimension_semantics=("parallel", "arbitrary"),
            vmem_limit_bytes=vmem_limit),
    )(mask, x)

    # NOTE: per-block tile sums are tree-reduced in f32; for extremely large
    # inputs a compensated cross-block sum would be safer, not needed here.
    denom = jnp.float32(NC * (H - 2) * (W - 2))
    return jnp.sum(partials) / denom


def _reference(depth):
    x = depth.astype(jnp.float32)
    center = x[:, :, 1:-1, 1:-1]
    horiz = 2.0 * center - x[:, :, 1:-1, :-2] - x[:, :, 1:-1, 2:]
    vert = 2.0 * center - x[:, :, :-2, 1:-1] - x[:, :, 2:, 1:-1]
    return jnp.mean(jnp.abs(horiz) + jnp.abs(vert))


if __name__ == "__main__":
    key = jax.random.PRNGKey(0)
    depth = jax.random.normal(key, (2, 4, 16, 16), dtype=jnp.float32)

    loss = smoothness_loss(depth)
    jax.block_until_ready(loss)

    ref = _reference(depth)
    assert jnp.allclose(loss, ref, rtol=1e-5, atol=1e-5), (loss, ref)
    print("KERNEL_OK")
</pallas_src>

<mosaic_0001>
module attributes {stable_mosaic.version = 11 : i64} {
  func.func @_smoothness_kernel(%arg0: i32, %arg1: i32, %arg2: memref<1x256xf32, #tpu.memory_space<vmem>>, %arg3: memref<8x256xf32, #tpu.memory_space<vmem>>, %arg4: memref<1x1x1xf32, #tpu.memory_space<vmem>>) attributes {dimension_semantics = [#tpu.dimension_semantics<parallel>, #tpu.dimension_semantics<arbitrary>], iteration_bounds = array<i64: 2, 1>, scalar_prefetch = 0 : i64, scratch_operands = 0 : i64, tpu.core_type = #tpu.core_type<tc>, window_params = [{pipeline_mode = #tpu.pipeline_mode<synchronous>, transform_indices = @transform_0, window_bounds = array<i64: 1, 256>}, {transform_indices = @transform_1, window_bounds = array<i64: 8, 256>}, {transform_indices = @transform_2, window_bounds = array<i64: 1, 1, 1>}]} {
    %c0_i32 = arith.constant 0 : i32
    %0 = arith.cmpi eq, %arg1, %c0_i32 : i32
    %1 = arith.extui %0 : i1 to i32
    %c0_i32_0 = arith.constant 0 : i32
    %2 = arith.cmpi ne, %1, %c0_i32_0 : i32
    scf.if %2 {
      %cst_13 = arith.constant 0.000000e+00 : f32
      %39 = vector.broadcast %cst_13 : f32 to vector<1x1x1xf32>
      %c0_14 = arith.constant 0 : index
      %c0_15 = arith.constant 0 : index
      %c0_16 = arith.constant 0 : index
      %40 = vector.load %arg4[%c0_14, %c0_15, %c0_16] : memref<1x1x1xf32, #tpu.memory_space<vmem>>, vector<1x1x1xf32>
      tpu.vector_store %arg4[%c0_14, %c0_15, %c0_16], %39 {strides = array<i32>} : memref<1x1x1xf32, #tpu.memory_space<vmem>>, vector<1x1x1xf32>,
    } else {
    }
    %c0 = arith.constant 0 : index
    %c0_1 = arith.constant 0 : index
    %3 = vector.load %arg3[%c0, %c0_1] : memref<8x256xf32, #tpu.memory_space<vmem>>, vector<8x256xf32>
    %c1_i32 = arith.constant 1 : i32
    %4 = tpu.dynamic_rotate %3 by %c1_i32 dim 1 : vector<8x256xf32>, i32 -> vector<8x256xf32>
    %c255_i32 = arith.constant 255 : i32
    %5 = tpu.dynamic_rotate %3 by %c255_i32 dim 1 : vector<8x256xf32>, i32 -> vector<8x256xf32>
    %c16_i32 = arith.constant 16 : i32
    %6 = tpu.dynamic_rotate %3 by %c16_i32 dim 1 : vector<8x256xf32>, i32 -> vector<8x256xf32>
    %c240_i32 = arith.constant 240 : i32
    %7 = tpu.dynamic_rotate %3 by %c240_i32 dim 1 : vector<8x256xf32>, i32 -> vector<8x256xf32>
    %8 = arith.addf %3, %3 : vector<8x256xf32>
    %9 = arith.subf %8, %4 : vector<8x256xf32>
    %10 = arith.subf %9, %5 : vector<8x256xf32>
    %11 = math.absf %10 : vector<8x256xf32>
    %12 = arith.subf %8, %6 : vector<8x256xf32>
    %13 = arith.subf %12, %7 : vector<8x256xf32>
    %14 = math.absf %13 : vector<8x256xf32>
    %15 = arith.addf %11, %14 : vector<8x256xf32>
    %c0_2 = arith.constant 0 : index
    %c0_3 = arith.constant 0 : index
    %16 = vector.load %arg2[%c0_2, %c0_3] : memref<1x256xf32, #tpu.memory_space<vmem>>, vector<1x256xf32>
    %17 = vector.broadcast %16 : vector<1x256xf32> to vector<8x256xf32>
    %18 = arith.mulf %15, %17 : vector<8x256xf32>
    %c1_i32_4 = arith.constant 1 : i32
    %19 = arith.muli %arg0, %c1_i32_4 : i32
    %20 = arith.addi %19, %arg1 : i32
    %c8_i32 = arith.constant 8 : i32
    %21 = arith.muli %20, %c8_i32 : i32
    %22 = tpu.iota {dimensions = array<i32: 0>} : vector<8x1xi32>
    %23 = vector.broadcast %21 : i32 to vector<8x1xi32>
    %24 = arith.addi %23, %22 : vector<8x1xi32>
    %c8_i32_5 = arith.constant 8 : i32
    %25 = vector.broadcast %c8_i32_5 : i32 to vector<8x1xi32>
    %26 = arith.cmpi slt, %24, %25 : vector<8x1xi32>
    %cst = arith.constant 0.000000e+00 : f32
    %27 = vector.shape_cast %26 : vector<8x1xi1> to vector<8x1xi1>
    %28 = vector.broadcast %27 : vector<8x1xi1> to vector<8x256xi1>
    %29 = vector.broadcast %cst : f32 to vector<8x256xf32>
    %30 = arith.select %28, %18, %29 : vector<8x256xi1>, vector<8x256xf32>
    %c0_6 = arith.constant 0 : index
    %c0_7 = arith.constant 0 : index
    %c0_8 = arith.constant 0 : index
    %31 = vector.load %arg4[%c0_6, %c0_7, %c0_8] : memref<1x1x1xf32, #tpu.memory_space<vmem>>, vector<1x1x1xf32>
    %32 = vector.shape_cast %30 : vector<8x256xf32> to vector<1x8x256xf32>
    %cst_9 = arith.constant dense<0.000000e+00> : vector<1xf32>
    %33 = vector.multi_reduction <add>, %32, %cst_9 [1, 2] : vector<1x8x256xf32> to vector<1xf32>
    %34 = vector.shape_cast %33 : vector<1xf32> to vector<1x1x1xf32>
    %35 = vector.extract %34[0, 0, 0] : f32 from vector<1x1x1xf32>
    %36 = vector.broadcast %35 : f32 to vector<1x1x1xf32>
    %37 = arith.addf %31, %36 : vector<1x1x1xf32>
    %c0_10 = arith.constant 0 : index
    %c0_11 = arith.constant 0 : index
    %c0_12 = arith.constant 0 : index
    %38 = vector.load %arg4[%c0_10, %c0_11, %c0_12] : memref<1x1x1xf32, #tpu.memory_space<vmem>>, vector<1x1x1xf32>
    tpu.vector_store %arg4[%c0_10, %c0_11, %c0_12], %37 {strides = array<i32>} : memref<1x1x1xf32, #tpu.memory_space<vmem>>, vector<1x1x1xf32>,
    return
  }
  func.func @transform_0(%arg0: i32, %arg1: i32) -> (i32, i32) {
    %c0_i32 = arith.constant 0 : i32
    %c0_i32_0 = arith.constant 0 : i32
    %c0_i32_1 = arith.constant 0 : i32
    return %c0_i32, %c0_i32_0 : i32, i32
  }
  func.func @transform_1(%arg0: i32, %arg1: i32) -> (i32, i32) {
    %c1_i32 = arith.constant 1 : i32
    %0 = arith.muli %arg0, %c1_i32 : i32
    %1 = arith.addi %0, %arg1 : i32
    %c0_i32 = arith.constant 0 : i32
    %2 = arith.minsi %1, %c0_i32 : i32
    %c0_i32_0 = arith.constant 0 : i32
    %c0_i32_1 = arith.constant 0 : i32
    return %2, %c0_i32_0 : i32, i32
  }
  func.func @transform_2(%arg0: i32, %arg1: i32) -> (i32, i32, i32) {
    %c0_i32 = arith.constant 0 : i32
    %c0_i32_0 = arith.constant 0 : i32
    %c0_i32_1 = arith.constant 0 : i32
    return %arg0, %c0_i32, %c0_i32_0 : i32, i32, i32
  }
}

</mosaic_0001>

<llo_original>
// kernel: tpu_custom_call.1
$region0: #{tpu_custom_call.1}
  #allocation0 [shape = 'u32[]', space=smem, size = 0x4, offset = 0x4, fixed_abs, tag = 'smem constant byte address 0x4 - core index']
  #allocation1 [shape = 'u32[144,128]{1,0:T(1,128)}', space=vmem, size = 0x12000, scoped, tag = 'internal scratch']
  %s0 = inlined_call_operand.hbm [shape: f32[1,256], index: 0, kind: input, shape index: {}]
  %s1 = inlined_call_operand.hbm [shape: f32[8,256], index: 1, kind: input, shape index: {}]
  %s2 = inlined_call_operand.vmem [shape: f32[2,1,1], index: 2, kind: output, shape index: {}]
  %s3 = sld [smem:[#allocation0]]
  $region53: #{tpu_custom_call.1} parent=0
    _
  %s5 = ssub.s32 1, %s3
  %s6 = scalar_select 0, %s5, %s3
  $region1: #{tpu_custom_call.1} parent=0
    #allocation2 [shape = 'u8[1024]{0}', space=vmem, size = 0x400, scoped, tag = 'input window, operand 0, single buffered']
    #allocation3 [shape = 's32[2]{0}', space=sflag, size = 0x8, scoped, tag = 'scoped memory for tpu_custom_call.1']
    #allocation4 [shape = 'u8[16384]{0}', space=vmem, size = 0x4000, scoped, tag = 'input window, operand 1']
    #allocation5 [shape = 's32[2]{0}', space=sflag, size = 0x8, scoped, tag = 'scoped memory for tpu_custom_call.1']
    %7 = vsyncpa [#allocation3], 0
    %8 = vsyncpa [#allocation5], 0
    %s9 = scalar_lea.sflag [#allocation5], 1
    %10 = vsyncpa %s9, 0
    loop: start=0, step=1, limit=4
    $region2: #{tpu_custom_call.1} parent=1 // loop_pre_header
      _
    $region3: #{tpu_custom_call.1} parent=1 // loop_header
      %s12 = sphi 0, %s16
      %p13 = scmp.ge.s32.totalorder %s12, 4
      %s19 = sphi 0, %s31
      %s20 = sphi 0, %s27
      %s21 = sphi 0, %s19
      %s22 = sphi 0, %s20
      %s23 = sphi 0, %s21
      %s24 = sphi 0, %s22
      %s32 = sphi 0, %s32
      %s34 = sphi 0, %s32
      %s35 = sphi 0, %s34
      %s49 = sphi 0, %s35
      %s61 = sphi 0, %s63
      %s64 = sphi 0, %s61
      %s65 = sphi 0, %s64
      %s81 = sphi 0, %s65
      %s87 = sphi 0, %s89
      %s90 = sphi 0, %s87
      %s91 = sphi 0, %s90
      %s107 = sphi 0, %s91
    $region4: #{tpu_custom_call.1} parent=1 // loop_header_branch
      %15 = sbr.rel (%p13) target = $region8
    $region5: #{tpu_custom_call.1} parent=1 // loop_body
      %s17 = ssub.s32 %s12, 1
      %s18 = ssub.s32 %s12, 2
      %s25 = sadd.s32 1, %s20
      %p26 = scmp.ge.s32.totalorder %s25, 1
      %s27 = scalar_select %p26, 0, %s25
      %s28 = sadd.s32 1, %s19
      %s29 = scalar_select %p26, %s28, %s19
      %p30 = scmp.ge.s32.totalorder %s29, 2
      %s31 = scalar_select %p30, 0, %s29
      %s33 = sadd.s32 %s32, 1
      %p36 = scmp.eq.s32.totalorder %s12, 1
      %p37 = scmp.ne.s32.totalorder %s32, %s34
      %p38 = scmp.eq.s32.totalorder %s12, 0
      %p39 = por %p37, %p38
      %p40 = scmp.ne.s32.totalorder %s32, %s34
      %p41 = scmp.eq.s32.totalorder %s17, 1
      %p42 = por %p40, %p41
      %p43 = scmp.ne.s32.totalorder %s34, %s35
      %p44 = scmp.eq.s32.totalorder %s17, 0
      %p45 = por %p43, %p44
      %p46 = scmp.ne.s32.totalorder %s34, %s35
      %p47 = scmp.eq.s32.totalorder %s18, 1
      %p48 = por %p46, %p47
      %p50 = scmp.ne.s32.totalorder %s35, %s49
      %p51 = scmp.eq.s32.totalorder %s18, 0
      %p52 = por %p50, %p51
      %s53 = sadd.s32 %s19, %s20
      %p54 = scmp.lt.s32.totalorder %s53, 0
      %s55 = scalar_select %p54, %s53, 0
      %s56 = sadd.s32 %s31, %s27
      %p57 = scmp.lt.s32.totalorder %s56, 0
      %s58 = scalar_select %p57, %s56, 0
      %s59 = ssub.s32 %s55, %s58
      %p60 = scmp.eq.s32.totalorder %s59, 0
      %s62 = sadd.s32 %s61, 1
      %s63 = scalar_select %p60, %s61, %s62
      %p66 = pneg %p60
      %p67 = scmp.eq.s32.totalorder %s12, 1
      %p68 = por %p66, %p67
      %p69 = scmp.ne.s32.totalorder %s61, %s64
      %p70 = scmp.eq.s32.totalorder %s12, 0
      %p71 = por %p69, %p70
      %p72 = scmp.ne.s32.totalorder %s61, %s64
      %p73 = scmp.eq.s32.totalorder %s17, 1
      %p74 = por %p72, %p73
      %p75 = scmp.ne.s32.totalorder %s64, %s65
      %p76 = scmp.eq.s32.totalorder %s17, 0
      %p77 = por %p75, %p76
      %p78 = scmp.ne.s32.totalorder %s64, %s65
      %p79 = scmp.eq.s32.totalorder %s18, 1
      %p80 = por %p78, %p79
      %p82 = scmp.ne.s32.totalorder %s65, %s81
      %p83 = scmp.eq.s32.totalorder %s18, 0
      %p84 = por %p82, %p83
      %s85 = ssub.s32 %s19, %s31
      %p86 = scmp.eq.s32.totalorder %s85, 0
      %s88 = sadd.s32 %s87, 1
      %s89 = scalar_select %p86, %s87, %s88
      %p92 = pneg %p86
      %p93 = scmp.eq.s32.totalorder %s12, 1
      %p94 = por %p92, %p93
      %p95 = scmp.ne.s32.totalorder %s87, %s90
      %p96 = scmp.eq.s32.totalorder %s12, 0
      %p97 = por %p95, %p96
      %p98 = scmp.ne.s32.totalorder %s87, %s90
      %p99 = scmp.eq.s32.totalorder %s17, 1
      %p100 = por %p98, %p99
      %p101 = scmp.ne.s32.totalorder %s90, %s91
      %p102 = scmp.eq.s32.totalorder %s17, 0
      %p103 = por %p101, %p102
      %p104 = scmp.ne.s32.totalorder %s90, %s91
      %p105 = scmp.eq.s32.totalorder %s18, 1
      %p106 = por %p104, %p105
      %p108 = scmp.ne.s32.totalorder %s91, %s107
      %p109 = scmp.eq.s32.totalorder %s18, 0
      %p110 = por %p108, %p109
      %p111 = scmp.le.s32.totalorder 1, %s12
      %p112 = scmp.lt.s32.totalorder %s12, 3
      %p113 = pnand %p111, %p112
      %p114 = pneg %p113
      // Predicated region
      $region9: #{tpu_custom_call.1} parent=5 // pred_check
        _
      $region10: #{tpu_custom_call.1} parent=5 // pred_check_branch
        %116 = sbr.rel (%p113) target = $region12
      $region11: #{tpu_custom_call.1} parent=5 // pred_region
        %s117 = ssub.s32 %s12, 1
        // Predicated region
        $region13: #{tpu_custom_call.1} parent=11 // pred_check
          %p118 = pneg %p45
        $region14: #{tpu_custom_call.1} parent=11 // pred_check_branch
          %120 = sbr.rel (%p118) target = $region16
        $region15: #{tpu_custom_call.1} parent=11 // pred_region
          %s122 = ssub.s32 32, 32
          %123 = vsyncadd [#allocation3], %s122
          %s125 = sshll.u32 [#allocation2], 4
          %s126 = int_to_ptr.vmem [resolvable:$true] %s125
          %128 = dma.hbm_to_vmem [thread:$0]  %s0, 32, %s126, [#allocation3]
        $region16: #{tpu_custom_call.1} parent=11 // pred_fallthru
          _
      $region12: #{tpu_custom_call.1} parent=5 // pred_fallthru
        _
      %p129 = scmp.lt.s32.totalorder %s12, 2
      // Predicated region
      $region17: #{tpu_custom_call.1} parent=5 // pred_check
        %p130 = pneg %p129
      $region18: #{tpu_custom_call.1} parent=5 // pred_check_branch
        %132 = sbr.rel (%p130) target = $region20
      $region19: #{tpu_custom_call.1} parent=5 // pred_region
        // Predicated region
        $region21: #{tpu_custom_call.1} parent=19 // pred_check
          %p133 = pneg %p71
        $region22: #{tpu_custom_call.1} parent=19 // pred_check_branch
          %135 = sbr.rel (%p133) target = $region24
        $region23: #{tpu_custom_call.1} parent=19 // pred_region
          %s136 = sand.u32 %s61, 1
          %s137 = scalar_lea.sflag [#allocation5], %s136
          %s138 = sand.u32 %s61, 1
          %s139 = smul.addr %s138, 16
          %s140 = scalar_lea.vmem [#allocation4], %s139
          %s141 = sadd.s32 %s19, %s20
          %p142 = scmp.lt.s32.totalorder %s141, 0
          %s143 = scalar_select %p142, %s141, 0
          %s145 = ssub.s32 256, 256
          %146 = vsyncadd %s137, %s145
          %s147 = smul.addr %s143, 2
          %s148 = smul.addr %s147, 128
          %s149 = scalar_lea.hbm %s1, %s148
          %s151 = sshll.u32 %s140, 4
          %s152 = int_to_ptr.vmem [resolvable:$true] %s151
          %154 = dma.hbm_to_vmem [thread:$0]  %s149, 256, %s152, %s137
        $region24: #{tpu_custom_call.1} parent=19 // pred_fallthru
          _
      $region20: #{tpu_custom_call.1} parent=5 // pred_fallthru
        _
      %p155 = scmp.le.s32.totalorder 1, %s12
      %p156 = scmp.lt.s32.totalorder %s12, 3
      %p157 = pnand %p155, %p156
      %p158 = pneg %p157
      // Predicated region
      $region25: #{tpu_custom_call.1} parent=5 // pred_check
        _
      $region26: #{tpu_custom_call.1} parent=5 // pred_check_branch
        %160 = sbr.rel (%p157) target = $region28
      $region27: #{tpu_custom_call.1} parent=5 // pred_region
        %s161 = ssub.s32 %s12, 1
        // Predicated region
        $region29: #{tpu_custom_call.1} parent=27 // pred_check
          %p162 = pneg %p45
        $region30: #{tpu_custom_call.1} parent=27 // pred_check_branch
          %164 = sbr.rel (%p162) target = $region32
        $region31: #{tpu_custom_call.1} parent=27 // pred_region
          %165 = dma.done [#allocation3], 32
        $region32: #{tpu_custom_call.1} parent=27 // pred_fallthru
          _
        %s166 = sand.u32 %s64, 1
        %s167 = scalar_lea.sflag [#allocation5], %s166
        %s168 = sand.u32 %s64, 1
        %s169 = smul.addr %s168, 16
        %s170 = scalar_lea.vmem [#allocation4], %s169
        // Predicated region
        $region33: #{tpu_custom_call.1} parent=27 // pred_check
          %p171 = pneg %p77
        $region34: #{tpu_custom_call.1} parent=27 // pred_check_branch
          %173 = sbr.rel (%p171) target = $region36
        $region35: #{tpu_custom_call.1} parent=27 // pred_region
          %174 = dma.done %s167, 256
        $region36: #{tpu_custom_call.1} parent=27 // pred_fallthru
          _
        %p175 = pneg %p45
        %p176 = pneg %p42
        %s177 = sand.u32 %s64, 1
        %s178 = scalar_lea.sflag [#allocation5], %s177
        %s179 = sand.u32 %s64, 1
        %s180 = smul.addr %s179, 16
        %s181 = scalar_lea.vmem [#allocation4], %s180
        %p182 = pneg %p77
        %p183 = pneg %p74
        %p184 = pneg %p103
        %p185 = pneg %p100
        %p186 = scmp.lt.s32.totalorder %s21, 1
        %s187 = scalar_select %p186, %s21, 1
        %s188 = scalar_lea.vmem %s2, %s187
        %s189 = sadd.s32 %s21, %s22
        %p190 = scmp.lt.s32.totalorder %s189, 0
        %s191 = scalar_select %p190, %s189, 0
        %p192 = scmp.lt.s32.totalorder %s21, 1
        %s193 = scalar_select %p192, %s21, 1
        %s194 = scalar_lea.vmem %s2, %s193
        %p195 = scmp.eq.s32.totalorder %s22, 0
        // Predicated region
        $region37: #{tpu_custom_call.1} parent=27 // pred_check
          %p196 = pneg %p195
        $region38: #{tpu_custom_call.1} parent=27 // pred_check_branch
          %198 = sbr.rel (%p196) target = $region40
        $region39: #{tpu_custom_call.1} parent=27 // pred_region
          %vm199 = vcmask 0
          %200 = vst.msk [vmem:[%s194] sm:$0x1] %vm199, 0.0
        $region40: #{tpu_custom_call.1} parent=27 // pred_fallthru
          _
        %v201 = vld [vmem:[%s170] sm:$0xff]
        %v202 = vld [vmem:[%s170 + $0x8] sm:$0xff]
        %203 = vrot.lane.b32.xlu0 %v201, 1
        %v204 = vpop.permute.xlu0 %203
        %205 = vrot.lane.b32.xlu0 %v202, 1
        %v206 = vpop.permute.xlu0 %205
        %v207 = vlaneseq
        %v208 = vand.u32 %v207, 127
        %vm209 = vcmp.lt.s32.totalorder %v208, 1
        %v210 = vsel %vm209, %v204, %v206
        %v211 = vsel %vm209, %v206, %v204
        %212 = vrot.lane.b32.xlu0 %v201, 127
        %v213 = vpop.permute.xlu0 %212
        %214 = vrot.lane.b32.xlu0 %v202, 127
        %v215 = vpop.permute.xlu0 %214
        %vm216 = vcmp.lt.s32.totalorder %v208, 127
        %v217 = vsel %vm216, %v213, %v215
        %v218 = vsel %vm216, %v215, %v213
        %219 = vrot.lane.b32.xlu0 %v201, 16
        %v220 = vpop.permute.xlu0 %219
        %221 = vrot.lane.b32.xlu0 %v202, 16
        %v222 = vpop.permute.xlu0 %221
        %vm223 = vcmp.lt.s32.totalorder %v208, 16
        %v224 = vsel %vm223, %v220, %v222
        %v225 = vsel %vm223, %v222, %v220
        %226 = vrot.lane.b32.xlu0 %v201, 112
        %v227 = vpop.permute.xlu0 %226
        %228 = vrot.lane.b32.xlu0 %v202, 112
        %v229 = vpop.permute.xlu0 %228
        %vm230 = vcmp.lt.s32.totalorder %v208, 112
        %v231 = vsel %vm230, %v227, %v229
        %v232 = vsel %vm230, %v229, %v227
        %v233 = vadd.f32 %v201, %v201
        %v234 = vadd.f32 %v202, %v202
        %v235 = vsub.f32 %v233, %v211
        %v236 = vsub.f32 %v234, %v210
        %v237 = vsub.f32 %v235, %v217
        %v238 = vsub.f32 %v236, %v218
        %v239 = vand.u32 2147483647, %v237
        %v240 = vand.u32 2147483647, %v238
        %v241 = vsub.f32 %v233, %v225
        %v242 = vsub.f32 %v234, %v224
        %v243 = vsub.f32 %v241, %v231
        %v244 = vsub.f32 %v242, %v232
        %v245 = vand.u32 2147483647, %v243
        %v246 = vand.u32 2147483647, %v244
        %v247 = vadd.f32 %v239, %v245
        %v248 = vadd.f32 %v240, %v246
        %v249 = vld [vmem:[#allocation2] sm:$0x3]
        %v251 = vlaneseq
        %v252 = vshrl.u32 %v251, 7
        %v253 = vsub.s32 0, %v252
        %v254 = vrot.slane %v249, %v253
        %v255 = vlaneseq
        %v256 = vshrl.u32 %v255, 7
        %v257 = vsub.s32 1, %v256
        %v258 = vrot.slane %v249, %v257
        %v261 = vmul.f32 %v247, %v254
        %v262 = vmul.f32 %v248, %v258
        %s263 = sadd.s32 %s21, %s22
        %s264 = smul.u32 %s263, 8
        %v265 = vlaneseq
        %v266 = vshrl.u32 %v265, 7
        %v267 = vstv %s264
        %v268 = vadd.s32 %v267, %v266
        %vm269 = vcmp.lt.s32.totalorder %v268, 8
        %v270 = vsel %vm269, 1, 0
        %vm271 = vcmp.eq.s32.totalorder %v270, 1
        %v272 = vsel %vm271, %v261, 0.0
        %v273 = vsel %vm271, %v262, 0.0
        %v274 = vld [vmem:[%s194] sm:$0x1]
        %v275 = vadd.f32 %v272, %v273
        %276 = vadd.xlane.f32.xlu0 %v275
        %v277 = vpop.xlane.xlu0 %276
        %v278 = vrot.slane %v277, 4
        %v279 = vadd.f32 %v277, %v278
        %v280 = vrot.slane %v279, 2
        %v281 = vadd.f32 %v279, %v280
        %v282 = vrot.slane %v281, 1
        %v283 = vadd.f32 %v281, %v282
        %s284 = vtos %v283
        %v285 = vstv %s284
        %v286 = vadd.f32 %v274, %v285
        %vm287 = vcmask 0
        %288 = vst.msk [vmem:[%s194] sm:$0x1] %vm287, %v286
        %p289 = scmp.lt.s32.totalorder %s21, 1
        %s290 = scalar_select %p289, %s21, 1
        %s291 = scalar_lea.vmem %s2, %s290
        // Predicated region
        $region41: #{tpu_custom_call.1} parent=27 // pred_check
          %p292 = pneg %p100
        $region42: #{tpu_custom_call.1} parent=27 // pred_check_branch
          %294 = sbr.rel (%p292) target = $region44
        $region43: #{tpu_custom_call.1} parent=27 // pred_region
          _
        $region44: #{tpu_custom_call.1} parent=27 // pred_fallthru
          _
      $region28: #{tpu_custom_call.1} parent=5 // pred_fallthru
        _
      %p295 = scmp.le.s32.totalorder 2, %s12
      // Predicated region
      $region45: #{tpu_custom_call.1} parent=5 // pred_check
        %p296 = pneg %p295
      $region46: #{tpu_custom_call.1} parent=5 // pred_check_branch
        %298 = sbr.rel (%p296) target = $region48
      $region47: #{tpu_custom_call.1} parent=5 // pred_region
        %s299 = ssub.s32 %s12, 2
        // Predicated region
        $region49: #{tpu_custom_call.1} parent=47 // pred_check
          %p300 = pneg %p106
        $region50: #{tpu_custom_call.1} parent=47 // pred_check_branch
          %302 = sbr.rel (%p300) target = $region52
        $region51: #{tpu_custom_call.1} parent=47 // pred_region
          %p303 = scmp.lt.s32.totalorder %s23, 1
          %s304 = scalar_select %p303, %s23, 1
          %s305 = scalar_lea.vmem %s2, %s304
        $region52: #{tpu_custom_call.1} parent=47 // pred_fallthru
          _
      $region48: #{tpu_custom_call.1} parent=5 // pred_fallthru
        _
    $region6: #{tpu_custom_call.1} parent=1 // loop_footer
      %s16 = sadd.s32 1, %s12
    $region7: #{tpu_custom_call.1} parent=1 // loop_footer_branch
      %11 = sbr.rel target = $region3
    $region8: #{tpu_custom_call.1} parent=1 // loop_exit
      _
    %306 = vsyncpa [#allocation3], 1
    %s307 = scalar_lea.sflag [#allocation3], 1
    %308 = vsyncpa %s307, 1
    %309 = vsyncpa [#allocation5], 1
    %s310 = scalar_lea.sflag [#allocation5], 1
    %311 = vsyncpa %s310, 1

</llo_original>
